<compile_context>
chip_gen: v7x
topology: tpu7x:2x2x1
jax: 0.10.0
libtpu: 0.0.40
codegen_flags: <defaults>
</compile_context>

<pallas_src>
import functools
import math

import jax
import jax.numpy as jnp
from jax.experimental import pallas as pl
from jax.experimental.pallas import tpu as pltpu

_LANES = 128
_SUBLANES = 8
_CHUNK_ROWS = 256  # rows per in-tile accumulation chunk (multiple of 8)


def _round_up(x, m):
    return (x + m - 1) // m * m


def _kl_loss_kernel(pred_ref, label_ref, out_ref, *, tm, rc, valid_rows_last,
                    ragged):
    """One row-tile: BCE-with-logits(pred, sigmoid(label)) folded to a single
    vreg-shaped (8, 128) partial sum written to this tile's output block."""
    n_chunks = tm // rc

    def chunk_loss(c):
        start = c * rc
        if not isinstance(start, int):
            start = pl.multiple_of(start, rc)
        x = pred_ref[pl.ds(start, rc), :].astype(jnp.float32)
        t = label_ref[pl.ds(start, rc), :].astype(jnp.float32)
        # sigmoid(t) with a single EUP op: 0.5 * tanh(0.5*t) + 0.5
        sig = 0.5 * jnp.tanh(0.5 * t) + 0.5
        # binary_cross_entropy_with_logits(x, sig) == softplus(x) - x * sig
        return jax.nn.softplus(x) - x * sig

    def fold(loss):
        # Sublane-group fold onto one (8, 128) vreg: pure VPU adds, no XLU.
        return loss.reshape(rc // _SUBLANES, _SUBLANES, _LANES).sum(axis=0)

    def accumulate(masked):
        def body(c, acc):
            loss = chunk_loss(c)
            if masked:
                # Tile-local row index (fits int32 trivially: < tm <= 4096).
                r = jax.lax.broadcasted_iota(jnp.int32, (rc, _LANES), 0) + c * rc
                loss = jnp.where(r < valid_rows_last, loss, 0.0)
            return acc + fold(loss)

        init = jnp.zeros((_SUBLANES, _LANES), jnp.float32)
        return jax.lax.fori_loop(0, n_chunks, body, init, unroll=True)

    if ragged:
        is_last = pl.program_id(0) == pl.num_programs(0) - 1

        @pl.when(jnp.logical_not(is_last))
        def _():
            out_ref[...] = accumulate(False).reshape(1, _SUBLANES, _LANES)

        @pl.when(is_last)
        def _():
            # Only the last tile pays for the row mask (partial block tail).
            out_ref[...] = accumulate(True).reshape(1, _SUBLANES, _LANES)
    else:
        out_ref[...] = accumulate(False).reshape(1, _SUBLANES, _LANES)


def kl_loss(pred, label, cur_iter=1, loss_weight=1.0, tm_max=4096):
    """KLLoss.forward with weight=None, reduction='mean', avg_factor=None."""
    assert pred.shape == label.shape
    n_elems = pred.size
    assert n_elems > 0

    rows = pl.cdiv(n_elems, _LANES)
    pad_lane = rows * _LANES - n_elems  # < 128; zero when numel is lane-aligned

    pred_flat = pred.reshape(-1)
    label_flat = label.reshape(-1)
    if pad_lane:
        # Minimal pad only when numel % 128 != 0 (unavoidable to form the
        # lane-dense view); padded zeros are corrected analytically below.
        pred_flat = jnp.pad(pred_flat, (0, pad_lane))
        label_flat = jnp.pad(label_flat, (0, pad_lane))
    pred2d = pred_flat.reshape(rows, _LANES)
    label2d = label_flat.reshape(rows, _LANES)

    # Tile-row selection: >= 2 tiles when possible (v7x megacore), capped at
    # tm_max, and a multiple of the chunk size rc.
    if rows <= _SUBLANES:
        tm = _SUBLANES
    else:
        tm = min(tm_max, _round_up(pl.cdiv(rows, 2), _SUBLANES))
    rc = min(_CHUNK_ROWS, tm)
    tm = _round_up(tm, rc)

    num_tiles = pl.cdiv(rows, tm)
    valid_rows_last = rows - (num_tiles - 1) * tm
    ragged = valid_rows_last != tm  # partial last block -> mask only there

    kernel = functools.partial(
        _kl_loss_kernel, tm=tm, rc=rc, valid_rows_last=valid_rows_last,
        ragged=ragged)

    partials = pl.pallas_call(
        kernel,
        out_shape=jax.ShapeDtypeStruct((num_tiles, _SUBLANES, _LANES),
                                       jnp.float32),
        grid=(num_tiles,),
        in_specs=[
            pl.BlockSpec((tm, _LANES), lambda i: (i, 0)),
            pl.BlockSpec((tm, _LANES), lambda i: (i, 0)),
        ],
        out_specs=pl.BlockSpec((1, _SUBLANES, _LANES), lambda i: (i, 0, 0)),
        compiler_params=pltpu.CompilerParams(
            dimension_semantics=("parallel",),   # independent tiles -> megacore
            vmem_limit_bytes=32 * 1024 * 1024,
        ),
    )(pred2d, label2d)

    # Tiny final reduction over (num_tiles, 8, 128) partials in plain JAX.
    total = jnp.sum(partials)
    if pad_lane:
        # Each padded zero contributed softplus(0) - 0*sigmoid(0) = ln(2).
        total = total - jnp.float32(pad_lane) * jnp.float32(math.log(2.0))
    mean_loss = total / jnp.float32(n_elems)
    return mean_loss * jnp.float32(loss_weight) * jnp.float32(cur_iter)


if __name__ == "__main__":
    key = jax.random.PRNGKey(0)
    k1, k2 = jax.random.split(key)

    def ref_loss(pred, label, cur_iter, loss_weight):
        p = pred.astype(jnp.float32)
        t = jax.nn.sigmoid(label.astype(jnp.float32))
        bce = jnp.maximum(p, 0.0) - p * t + jnp.log1p(jnp.exp(-jnp.abs(p)))
        return jnp.mean(bce) * loss_weight * cur_iter

    # NCHW, same convention as PyTorch segmentation logits (lane-aligned numel).
    x_shape = (2, 4, 16, 16)
    pred = jax.random.normal(k1, x_shape, dtype=jnp.float32)
    label = jax.random.normal(k2, x_shape, dtype=jnp.float32)
    out = jax.block_until_ready(kl_loss(pred, label, cur_iter=1, loss_weight=1.0))
    ref = ref_loss(pred, label, 1, 1.0)
    assert jnp.allclose(out, ref, rtol=1e-4, atol=1e-6), (out, ref)

    # Non-128-aligned numel: exercises the minimal lane pad + analytic ln(2)
    # correction + pl.when-gated ragged-row mask on the last tile only.
    y_shape = (2, 3, 13, 17)
    pred2 = jax.random.normal(k1, y_shape, dtype=jnp.float32)
    label2 = jax.random.normal(k2, y_shape, dtype=jnp.float32)
    out2 = jax.block_until_ready(kl_loss(pred2, label2, cur_iter=3, loss_weight=0.5))
    ref2 = ref_loss(pred2, label2, 3, 0.5)
    assert jnp.allclose(out2, ref2, rtol=1e-4, atol=1e-6), (out2, ref2)

    # bf16 inputs (halves HBM read traffic); in-kernel math stays f32.
    pred3 = pred.astype(jnp.bfloat16)
    label3 = label.astype(jnp.bfloat16)
    out3 = jax.block_until_ready(kl_loss(pred3, label3))
    ref3 = ref_loss(pred3, label3, 1, 1.0)
    assert jnp.allclose(out3, ref3, rtol=1e-4, atol=1e-6), (out3, ref3)

    print("KERNEL_OK")
</pallas_src>

<mosaic_0001>
module attributes {stable_mosaic.version = 11 : i64} {
  func.func @_kl_loss_kernel(%arg0: i32, %arg1: memref<8x128xf32, #tpu.memory_space<vmem>>, %arg2: memref<8x128xf32, #tpu.memory_space<vmem>>, %arg3: memref<1x8x128xf32, #tpu.memory_space<vmem>>) attributes {dimension_semantics = [#tpu.dimension_semantics<parallel>], iteration_bounds = array<i64: 2>, scalar_prefetch = 0 : i64, scratch_operands = 0 : i64, tpu.core_type = #tpu.core_type<tc>, window_params = [{transform_indices = @transform_0, window_bounds = array<i64: 8, 128>}, {transform_indices = @transform_1, window_bounds = array<i64: 8, 128>}, {transform_indices = @transform_2, window_bounds = array<i64: 1, 8, 128>}]} {
    %cst = arith.constant 0.000000e+00 : f32
    %0 = vector.broadcast %cst : f32 to vector<8x128xf32>
    %c0_i32 = arith.constant 0 : i32
    %c8_i32 = arith.constant 8 : i32
    %1 = arith.muli %c0_i32, %c8_i32 : i32
    %2 = tpu.assume_multiple %1, 8 : i32
    %3 = arith.index_cast %2 : i32 to index
    %c0 = arith.constant 0 : index
    %4 = vector.load %arg1[%3, %c0] : memref<8x128xf32, #tpu.memory_space<vmem>>, vector<8x128xf32>
    %5 = arith.index_cast %2 : i32 to index
    %c0_0 = arith.constant 0 : index
    %6 = vector.load %arg2[%5, %c0_0] : memref<8x128xf32, #tpu.memory_space<vmem>>, vector<8x128xf32>
    %cst_1 = arith.constant 5.000000e-01 : f32
    %7 = vector.broadcast %cst_1 : f32 to vector<8x128xf32>
    %8 = arith.mulf %7, %6 : vector<8x128xf32>
    %9 = math.tanh %8 : vector<8x128xf32>
    %cst_2 = arith.constant 5.000000e-01 : f32
    %10 = vector.broadcast %cst_2 : f32 to vector<8x128xf32>
    %11 = arith.mulf %10, %9 : vector<8x128xf32>
    %cst_3 = arith.constant 5.000000e-01 : f32
    %12 = vector.broadcast %cst_3 : f32 to vector<8x128xf32>
    %13 = arith.addf %11, %12 : vector<8x128xf32>
    %cst_4 = arith.constant 0.000000e+00 : f32
    %14 = vector.broadcast %cst_4 : f32 to vector<8x128xf32>
    %15 = arith.maximumf %4, %14 : vector<8x128xf32>
    %16 = vector.broadcast %cst_4 : f32 to vector<8x128xf32>
    %17 = arith.subf %4, %16 : vector<8x128xf32>
    %18 = arith.cmpf one, %17, %17 : vector<8x128xf32>
    %19 = vector.broadcast %cst_4 : f32 to vector<8x128xf32>
    %20 = arith.addf %4, %19 : vector<8x128xf32>
    %21 = math.absf %17 : vector<8x128xf32>
    %cst_5 = arith.constant 0.000000e+00 : f32
    %22 = vector.broadcast %cst_5 : f32 to vector<8x128xf32>
    %23 = arith.subf %22, %21 : vector<8x128xf32>
    %24 = math.exp %23 : vector<8x128xf32>
    %25 = math.log1p %24 : vector<8x128xf32>
    %26 = arith.addf %15, %25 : vector<8x128xf32>
    %27 = arith.select %18, %20, %26 : vector<8x128xi1>, vector<8x128xf32>
    %28 = arith.mulf %4, %13 : vector<8x128xf32>
    %29 = arith.subf %27, %28 : vector<8x128xf32>
    %30 = vector.shape_cast %29 : vector<8x128xf32> to vector<1x8x128xf32>
    %cst_6 = arith.constant dense<0.000000e+00> : vector<8x128xf32>
    %31 = vector.multi_reduction <add>, %30, %cst_6 [0] : vector<1x8x128xf32> to vector<8x128xf32>
    %32 = arith.addf %0, %31 : vector<8x128xf32>
    %c1_i32 = arith.constant 1 : i32
    %33 = vector.shape_cast %32 : vector<8x128xf32> to vector<1x8x128xf32>
    %c0_7 = arith.constant 0 : index
    %c0_8 = arith.constant 0 : index
    %c0_9 = arith.constant 0 : index
    %34 = vector.load %arg3[%c0_7, %c0_8, %c0_9] : memref<1x8x128xf32, #tpu.memory_space<vmem>>, vector<1x8x128xf32>
    tpu.vector_store %arg3[%c0_7, %c0_8, %c0_9], %33 {strides = array<i32>} : memref<1x8x128xf32, #tpu.memory_space<vmem>>, vector<1x8x128xf32>,
    return
  }
  func.func @transform_0(%arg0: i32) -> (i32, i32) {
    %c0_i32 = arith.constant 0 : i32
    %c0_i32_0 = arith.constant 0 : i32
    return %arg0, %c0_i32 : i32, i32
  }
  func.func @transform_1(%arg0: i32) -> (i32, i32) {
    %c0_i32 = arith.constant 0 : i32
    %c0_i32_0 = arith.constant 0 : i32
    return %arg0, %c0_i32 : i32, i32
  }
  func.func @transform_2(%arg0: i32) -> (i32, i32, i32) {
    %c0_i32 = arith.constant 0 : i32
    %c0_i32_0 = arith.constant 0 : i32
    %c0_i32_1 = arith.constant 0 : i32
    return %arg0, %c0_i32, %c0_i32_0 : i32, i32, i32
  }
}

</mosaic_0001>

<llo_original>
// kernel: tpu_custom_call.1
$region0: #{tpu_custom_call.1}
  #allocation0 [shape = 'u32[]', space=smem, size = 0x4, offset = 0x4, fixed_abs, tag = 'smem constant byte address 0x4 - core index']
  #allocation1 [shape = 'u32[144,128]{1,0:T(1,128)}', space=vmem, size = 0x12000, scoped, tag = 'internal scratch']
  %s0 = inlined_call_operand.hbm [shape: f32[16,128], index: 0, kind: input, shape index: {}]
  %s1 = inlined_call_operand.hbm [shape: f32[16,128], index: 1, kind: input, shape index: {}]
  %s2 = inlined_call_operand.hbm [shape: f32[2,8,128], index: 2, kind: output, shape index: {}]
  %s3 = sld [smem:[#allocation0]]
  $region49: #{tpu_custom_call.1} parent=0
    _
  %s5 = ssub.s32 1, %s3
  %s6 = scalar_select 0, %s5, %s3
  $region1: #{tpu_custom_call.1} parent=0
    #allocation2 [shape = 'u8[8192]{0}', space=vmem, size = 0x2000, scoped, tag = 'input window, operand 0']
    #allocation3 [shape = 's32[2]{0}', space=sflag, size = 0x8, scoped, tag = 'scoped memory for tpu_custom_call.1']
    #allocation4 [shape = 's32[2]{0}', space=sflag, size = 0x8, scoped, tag = 'scoped memory for tpu_custom_call.1']
    #allocation5 [shape = 'u8[8192]{0}', space=vmem, size = 0x2000, scoped, tag = 'input window, operand 1']
    #allocation6 [shape = 's32[2]{0}', space=sflag, size = 0x8, scoped, tag = 'scoped memory for tpu_custom_call.1']
    #allocation7 [shape = 'u8[8192]{0}', space=vmem, size = 0x2000, scoped, tag = 'output window, operand 0']
    %7 = vsyncpa [#allocation3], 0
    %s8 = scalar_lea.sflag [#allocation3], 1
    %9 = vsyncpa %s8, 0
    %10 = vsyncpa [#allocation6], 0
    %s11 = scalar_lea.sflag [#allocation6], 1
    %12 = vsyncpa %s11, 0
    %13 = vsyncpa [#allocation4], 0
    %s14 = scalar_lea.sflag [#allocation4], 1
    %15 = vsyncpa %s14, 0
    loop: start=0, step=1, limit=4
    $region2: #{tpu_custom_call.1} parent=1 // loop_pre_header
      _
    $region3: #{tpu_custom_call.1} parent=1 // loop_header
      %s17 = sphi 0, %s21
      %p18 = scmp.ge.s32.totalorder %s17, 4
      %s27 = sphi 0, %s29
      %s30 = sphi 0, %s27
      %s31 = sphi 0, %s30
      %s47 = sphi 0, %s31
      %s53 = sphi 0, %s55
      %s56 = sphi 0, %s53
      %s57 = sphi 0, %s56
      %s73 = sphi 0, %s57
      %s79 = sphi 0, %s81
      %s82 = sphi 0, %s79
      %s83 = sphi 0, %s82
      %s99 = sphi 0, %s83
    $region4: #{tpu_custom_call.1} parent=1 // loop_header_branch
      %20 = sbr.rel (%p18) target = $region8
    $region5: #{tpu_custom_call.1} parent=1 // loop_body
      %s22 = ssub.s32 %s17, 1
      %s23 = ssub.s32 %s17, 2
      %s24 = sadd.s32 %s17, 1
      %s25 = ssub.s32 %s17, %s24
      %p26 = scmp.eq.s32.totalorder %s25, 0
      %s28 = sadd.s32 %s27, 1
      %s29 = scalar_select %p26, %s27, %s28
      %p32 = pneg %p26
      %p33 = scmp.eq.s32.totalorder %s17, 1
      %p34 = por %p32, %p33
      %p35 = scmp.ne.s32.totalorder %s27, %s30
      %p36 = scmp.eq.s32.totalorder %s17, 0
      %p37 = por %p35, %p36
      %p38 = scmp.ne.s32.totalorder %s27, %s30
      %p39 = scmp.eq.s32.totalorder %s22, 1
      %p40 = por %p38, %p39
      %p41 = scmp.ne.s32.totalorder %s30, %s31
      %p42 = scmp.eq.s32.totalorder %s22, 0
      %p43 = por %p41, %p42
      %p44 = scmp.ne.s32.totalorder %s30, %s31
      %p45 = scmp.eq.s32.totalorder %s23, 1
      %p46 = por %p44, %p45
      %p48 = scmp.ne.s32.totalorder %s31, %s47
      %p49 = scmp.eq.s32.totalorder %s23, 0
      %p50 = por %p48, %p49
      %s51 = ssub.s32 %s17, %s24
      %p52 = scmp.eq.s32.totalorder %s51, 0
      %s54 = sadd.s32 %s53, 1
      %s55 = scalar_select %p52, %s53, %s54
      %p58 = pneg %p52
      %p59 = scmp.eq.s32.totalorder %s17, 1
      %p60 = por %p58, %p59
      %p61 = scmp.ne.s32.totalorder %s53, %s56
      %p62 = scmp.eq.s32.totalorder %s17, 0
      %p63 = por %p61, %p62
      %p64 = scmp.ne.s32.totalorder %s53, %s56
      %p65 = scmp.eq.s32.totalorder %s22, 1
      %p66 = por %p64, %p65
      %p67 = scmp.ne.s32.totalorder %s56, %s57
      %p68 = scmp.eq.s32.totalorder %s22, 0
      %p69 = por %p67, %p68
      %p70 = scmp.ne.s32.totalorder %s56, %s57
      %p71 = scmp.eq.s32.totalorder %s23, 1
      %p72 = por %p70, %p71
      %p74 = scmp.ne.s32.totalorder %s57, %s73
      %p75 = scmp.eq.s32.totalorder %s23, 0
      %p76 = por %p74, %p75
      %s77 = ssub.s32 %s17, %s24
      %p78 = scmp.eq.s32.totalorder %s77, 0
      %s80 = sadd.s32 %s79, 1
      %s81 = scalar_select %p78, %s79, %s80
      %p84 = pneg %p78
      %p85 = scmp.eq.s32.totalorder %s17, 1
      %p86 = por %p84, %p85
      %p87 = scmp.ne.s32.totalorder %s79, %s82
      %p88 = scmp.eq.s32.totalorder %s17, 0
      %p89 = por %p87, %p88
      %p90 = scmp.ne.s32.totalorder %s79, %s82
      %p91 = scmp.eq.s32.totalorder %s22, 1
      %p92 = por %p90, %p91
      %p93 = scmp.ne.s32.totalorder %s82, %s83
      %p94 = scmp.eq.s32.totalorder %s22, 0
      %p95 = por %p93, %p94
      %p96 = scmp.ne.s32.totalorder %s82, %s83
      %p97 = scmp.eq.s32.totalorder %s23, 1
      %p98 = por %p96, %p97
      %p100 = scmp.ne.s32.totalorder %s83, %s99
      %p101 = scmp.eq.s32.totalorder %s23, 0
      %p102 = por %p100, %p101
      %p103 = scmp.le.s32.totalorder 1, %s17
      %p104 = scmp.lt.s32.totalorder %s17, 3
      %p105 = pnand %p103, %p104
      %p106 = pneg %p105
      // Predicated region
      $region9: #{tpu_custom_call.1} parent=5 // pred_check
        _
      $region10: #{tpu_custom_call.1} parent=5 // pred_check_branch
        %108 = sbr.rel (%p105) target = $region12
      $region11: #{tpu_custom_call.1} parent=5 // pred_region
        %s109 = ssub.s32 %s17, 1
      $region12: #{tpu_custom_call.1} parent=5 // pred_fallthru
        _
      %p110 = scmp.lt.s32.totalorder %s17, 2
      // Predicated region
      $region13: #{tpu_custom_call.1} parent=5 // pred_check
        %p111 = pneg %p110
      $region14: #{tpu_custom_call.1} parent=5 // pred_check_branch
        %113 = sbr.rel (%p111) target = $region16
      $region15: #{tpu_custom_call.1} parent=5 // pred_region
        // Predicated region
        $region17: #{tpu_custom_call.1} parent=15 // pred_check
          %p114 = pneg %p37
        $region18: #{tpu_custom_call.1} parent=15 // pred_check_branch
          %116 = sbr.rel (%p114) target = $region20
        $region19: #{tpu_custom_call.1} parent=15 // pred_region
          %s117 = sand.u32 %s27, 1
          %s118 = scalar_lea.sflag [#allocation3], %s117
          %s119 = sand.u32 %s27, 1
          %s120 = smul.addr %s119, 8
          %s121 = scalar_lea.vmem [#allocation2], %s120
          %s123 = ssub.s32 128, 128
          %124 = vsyncadd %s118, %s123
          %s125 = smul.addr %s17, 128
          %s126 = scalar_lea.hbm %s0, %s125
          %s128 = sshll.u32 %s121, 4
          %s129 = int_to_ptr.vmem [resolvable:$true] %s128
          %131 = dma.hbm_to_vmem [thread:$0]  %s126, 128, %s129, %s118
        $region20: #{tpu_custom_call.1} parent=15 // pred_fallthru
          _
        // Predicated region
        $region21: #{tpu_custom_call.1} parent=15 // pred_check
          %p132 = pneg %p63
        $region22: #{tpu_custom_call.1} parent=15 // pred_check_branch
          %134 = sbr.rel (%p132) target = $region24
        $region23: #{tpu_custom_call.1} parent=15 // pred_region
          %s135 = sand.u32 %s53, 1
          %s136 = scalar_lea.sflag [#allocation6], %s135
          %s137 = sand.u32 %s53, 1
          %s138 = smul.addr %s137, 8
          %s139 = scalar_lea.vmem [#allocation5], %s138
          %s141 = ssub.s32 128, 128
          %142 = vsyncadd %s136, %s141
          %s143 = smul.addr %s17, 128
          %s144 = scalar_lea.hbm %s1, %s143
          %s146 = sshll.u32 %s139, 4
          %s147 = int_to_ptr.vmem [resolvable:$true] %s146
          %149 = dma.hbm_to_vmem [thread:$0]  %s144, 128, %s147, %s136
        $region24: #{tpu_custom_call.1} parent=15 // pred_fallthru
          _
      $region16: #{tpu_custom_call.1} parent=5 // pred_fallthru
        _
      %p150 = scmp.le.s32.totalorder 1, %s17
      %p151 = scmp.lt.s32.totalorder %s17, 3
      %p152 = pnand %p150, %p151
      %p153 = pneg %p152
      // Predicated region
      $region25: #{tpu_custom_call.1} parent=5 // pred_check
        _
      $region26: #{tpu_custom_call.1} parent=5 // pred_check_branch
        %155 = sbr.rel (%p152) target = $region28
      $region27: #{tpu_custom_call.1} parent=5 // pred_region
        %s156 = ssub.s32 %s17, 1
        %s157 = sand.u32 %s30, 1
        %s158 = scalar_lea.sflag [#allocation3], %s157
        %s159 = sand.u32 %s30, 1
        %s160 = smul.addr %s159, 8
        %s161 = scalar_lea.vmem [#allocation2], %s160
        // Predicated region
        $region29: #{tpu_custom_call.1} parent=27 // pred_check
          %p162 = pneg %p43
        $region30: #{tpu_custom_call.1} parent=27 // pred_check_branch
          %164 = sbr.rel (%p162) target = $region32
        $region31: #{tpu_custom_call.1} parent=27 // pred_region
          %165 = dma.done %s158, 128
        $region32: #{tpu_custom_call.1} parent=27 // pred_fallthru
          _
        %s166 = sand.u32 %s56, 1
        %s167 = scalar_lea.sflag [#allocation6], %s166
        %s168 = sand.u32 %s56, 1
        %s169 = smul.addr %s168, 8
        %s170 = scalar_lea.vmem [#allocation5], %s169
        // Predicated region
        $region33: #{tpu_custom_call.1} parent=27 // pred_check
          %p171 = pneg %p69
        $region34: #{tpu_custom_call.1} parent=27 // pred_check_branch
          %173 = sbr.rel (%p171) target = $region36
        $region35: #{tpu_custom_call.1} parent=27 // pred_region
          %174 = dma.done %s167, 128
        $region36: #{tpu_custom_call.1} parent=27 // pred_fallthru
          _
        %s175 = sand.u32 %s30, 1
        %s176 = scalar_lea.sflag [#allocation3], %s175
        %s177 = sand.u32 %s30, 1
        %s178 = smul.addr %s177, 8
        %s179 = scalar_lea.vmem [#allocation2], %s178
        %p180 = pneg %p43
        %p181 = pneg %p40
        %s182 = sand.u32 %s56, 1
        %s183 = scalar_lea.sflag [#allocation6], %s182
        %s184 = sand.u32 %s56, 1
        %s185 = smul.addr %s184, 8
        %s186 = scalar_lea.vmem [#allocation5], %s185
        %p187 = pneg %p69
        %p188 = pneg %p66
        %p189 = pneg %p95
        %p190 = pneg %p92
        %s191 = sand.u32 %s82, 1
        %s192 = scalar_lea.sflag [#allocation4], %s191
        %s193 = sand.u32 %s82, 1
        %s194 = smul.addr %s193, 8
        %s195 = scalar_lea.vmem [#allocation7], %s194
        %v196 = vld [vmem:[%s161] sm:$0xff]
        %v197 = vld [vmem:[%s170] sm:$0xff]
        %v198 = vmul.f32 %v197, 0.5
        %v199 = vtanh.pop %v198
        %v200 = vmul.f32 %v199, 0.5
        %v201 = vadd.f32 %v200, 0.5
        %v202 = vmax.f32 %v196, 0.0
        %vm203 = vcmp.ne.f32.partialorder %v196, %v196
        %v204 = vadd.f32 %v196, 0.0
        %v205 = vand.u32 2147483647, %v196
        %v206 = vsub.f32 0.0, %v205
        %v207 = vmul.f32 %v206, 1.442695
        %v208 = vpow.pop %v207
        %v209 = vadd.f32 %v208, 1.0
        %v210 = vlog2.pop %v209
        %v211 = vmul.f32 %v210, 0.6931472
        %v212 = vmul.f32 -0.5, %v208
        %v213 = vadd.f32 %v212, 1.0
        %v214 = vmul.f32 %v213, %v208
        %v215 = vand.u32 2147483647, %v208
        %vm216 = vcmp.lt.f32.partialorder %v215, 0.0004427343
        %v217 = vsel %vm216, %v214, %v211
        %v218 = vadd.f32 %v202, %v217
        %v219 = vsel %vm203, %v204, %v218
        %v220 = vmul.f32 %v196, %v201
        %v221 = vsub.f32 %v219, %v220
        %v222 = vadd.f32 %v221, 0.0
        %v223 = vadd.f32 %v222, 0.0
        %224 = vst [vmem:[%s195] sm:$0xff] %v223
        %s225 = sand.u32 %s82, 1
        %s226 = scalar_lea.sflag [#allocation4], %s225
        %s227 = sand.u32 %s82, 1
        %s228 = smul.addr %s227, 8
        %s229 = scalar_lea.vmem [#allocation7], %s228
        // Predicated region
        $region37: #{tpu_custom_call.1} parent=27 // pred_check
          %p230 = pneg %p92
        $region38: #{tpu_custom_call.1} parent=27 // pred_check_branch
          %232 = sbr.rel (%p230) target = $region40
        $region39: #{tpu_custom_call.1} parent=27 // pred_region
          %s234 = ssub.s32 128, 128
          %235 = vsyncadd %s226, %s234
          %s236 = smul.addr %s22, 128
          %s237 = scalar_lea.hbm %s2, %s236
          %s239 = sshll.u32 %s229, 4
          %s240 = int_to_ptr.vmem [resolvable:$true] %s239
          %242 = dma.vmem_to_hbm [thread:$0]  %s240, 128, %s237, %s226
        $region40: #{tpu_custom_call.1} parent=27 // pred_fallthru
          _
      $region28: #{tpu_custom_call.1} parent=5 // pred_fallthru
        _
      %p243 = scmp.le.s32.totalorder 2, %s17
      // Predicated region
      $region41: #{tpu_custom_call.1} parent=5 // pred_check
        %p244 = pneg %p243
      $region42: #{tpu_custom_call.1} parent=5 // pred_check_branch
        %246 = sbr.rel (%p244) target = $region44
      $region43: #{tpu_custom_call.1} parent=5 // pred_region
        %s247 = ssub.s32 %s17, 2
        // Predicated region
        $region45: #{tpu_custom_call.1} parent=43 // pred_check
          %p248 = pneg %p98
        $region46: #{tpu_custom_call.1} parent=43 // pred_check_branch
          %250 = sbr.rel (%p248) target = $region48
        $region47: #{tpu_custom_call.1} parent=43 // pred_region
          %s251 = sand.u32 %s83, 1
          %s252 = scalar_lea.sflag [#allocation4], %s251
          %s253 = sand.u32 %s83, 1
          %s254 = smul.addr %s253, 8
          %s255 = scalar_lea.vmem [#allocation7], %s254
          %256 = dma.done %s252, 128
        $region48: #{tpu_custom_call.1} parent=43 // pred_fallthru
          _
      $region44: #{tpu_custom_call.1} parent=5 // pred_fallthru
        _
    $region6: #{tpu_custom_call.1} parent=1 // loop_footer
      %s21 = sadd.s32 1, %s17
    $region7: #{tpu_custom_call.1} parent=1 // loop_footer_branch
      %16 = sbr.rel target = $region3
    $region8: #{tpu_custom_call.1} parent=1 // loop_exit
      _
    %257 = vsyncpa [#allocation3], 1
    %s258 = scalar_lea.sflag [#allocation3], 1
    %259 = vsyncpa %s258, 1
    %260 = vsyncpa [#allocation6], 1
    %s261 = scalar_lea.sflag [#allocation6], 1
    %262 = vsyncpa %s261, 1
    %263 = vsyncpa [#allocation4], 1
    %s264 = scalar_lea.sflag [#allocation4], 1
    %265 = vsyncpa %s264, 1

</llo_original>
